<compile_context>
chip_gen: v7x
topology: tpu7x:2x2x1
jax: 0.10.0
libtpu: 0.0.40
codegen_flags: <defaults>
</compile_context>

<pallas_src>
import functools
from math import sqrt

import jax
import jax.numpy as jnp
from jax.experimental import pallas as pl
from jax.experimental.pallas import tpu as pltpu


# ----------------------------------------------------------------------------
# Kernel: one (batch block, time chunk) grid step
# ----------------------------------------------------------------------------
def _rnn_chunk_kernel(x_ref, noise_ref, wi_ref, wrec_ref, wo_ref, h0_ref,
                      out_ref, h_scr, r_scr, rbuf_ref, *,
                      noise_std, one_minus_alpha, t_tile):
    B_BLK, T_BLK, I = x_ref.shape
    H = wrec_ref.shape[0]
    O = out_ref.shape[2]

    # (Re)initialize the carried state at the first time chunk of every batch
    # block (time is the innermost grid axis).
    @pl.when(pl.program_id(1) == 0)
    def _init():
        h0 = jnp.broadcast_to(h0_ref[...], (B_BLK, H))
        h_scr[...] = h0
        r_scr[...] = jnp.tanh(h0)

    wi = wi_ref[...]        # (I, H), pre-scaled by alpha on the host
    wrec = wrec_ref[...]    # (H, H), pre-scaled by alpha on the host
    wo = wo_ref[...]        # (H, O), pre-scaled by 1/H on the host

    h = h_scr[...]          # (B_BLK, H) carried across chunks
    r = r_scr[...]

    n_tiles = T_BLK // t_tile

    def tile_body(tt, carry):
        h, r = carry
        base = pl.multiple_of(tt * t_tile, t_tile)

        # ---- drive for this tile: full-tile loads, off the serial chain ----
        nt = noise_ref[:, pl.ds(base, t_tile), :]              # (B_BLK, t_tile, H)
        xt = x_ref[:, pl.ds(base, t_tile), :]                  # (B_BLK, t_tile, I)
        # I is tiny (1 here): x @ (alpha*wi) as broadcast multiply-adds (VPU).
        xw = xt[:, :, 0:1] * wi[0:1, :][None, :, :]            # (B_BLK, t_tile, H)
        for i in range(1, I):                                  # static, tiny
            xw = xw + xt[:, :, i:i + 1] * wi[i:i + 1, :][None, :, :]
        drive = noise_std * nt + xw                            # (B_BLK, t_tile, H)

        # ---- t_tile statically-unrolled recurrence steps from registers ----
        for k in range(t_tile):
            rec = jnp.dot(r, wrec, preferred_element_type=jnp.float32)  # (B_BLK, H)
            # "(1-alpha)*h + drive" has no dependence on the matmul result, so
            # it overlaps the MXU; only one add + tanh follow the matmul pop.
            h = (one_minus_alpha * h + drive[:, k, :]) + rec
            r = jnp.tanh(h)
            # Buffer r for the deferred output projection.  This store is off
            # the critical chain (nothing reads rbuf_ref until after the loop)
            # and targets a buffer distinct from the one feeding drive, so no
            # store->load false dependence is created.
            rbuf_ref[:, pl.ds(base + k, 1), :] = r[:, None, :]
        return h, r

    tile_unroll = True if n_tiles <= 8 else 4
    h, r = jax.lax.fori_loop(0, n_tiles, tile_body, (h, r), unroll=tile_unroll)

    h_scr[...] = h
    r_scr[...] = r

    # ---- deferred output projection for the whole chunk (1/H folded in wo) --
    # T_BLK is a multiple of 8, so this reshape is layout-preserving.
    r_all = rbuf_ref[...].reshape(B_BLK * T_BLK, H)
    out = jnp.dot(r_all, wo, preferred_element_type=jnp.float32)
    out_ref[...] = out.reshape(B_BLK, T_BLK, O).astype(out_ref.dtype)


# ----------------------------------------------------------------------------
# Wrapper (native (B, T, .) layouts end to end; no host-side transposes)
# ----------------------------------------------------------------------------
def handmade_rnn_forward(x, noise, h0, wi, w_rec, wo, *, noise_std, alpha,
                         t_tile=8, t_block=128, b_block=None):
    """x: (B,T,I), noise: (B,T,H), h0: (H,), wi: (I,H), w_rec: (H,H), wo: (H,O).
    Returns (B, T, O), matching HandMadeTrainableRNN.forward."""
    B, T, I = x.shape
    H = w_rec.shape[0]
    O = wo.shape[1]

    x = x.astype(jnp.float32)
    noise = noise.astype(jnp.float32)
    h0_2d = h0.reshape(1, H).astype(jnp.float32)
    wi_a = alpha * wi.astype(jnp.float32)          # fold alpha into wi
    wrec_a = alpha * w_rec.astype(jnp.float32)     # fold alpha into w_rec
    wo_s = wo.astype(jnp.float32) / H              # fold 1/hidden_size into wo

    # --- time chunking: T_BLK multiple of t_tile; pad T to a multiple of it ---
    t_block = max(t_tile, (t_block // t_tile) * t_tile)
    T_BLK = min(t_block, ((T + t_tile - 1) // t_tile) * t_tile)
    T_pad = ((T + T_BLK - 1) // T_BLK) * T_BLK
    if T_pad != T:
        # Padded trailing steps only influence padded outputs (recurrence is
        # strictly forward in time), which are sliced off below.
        pad = ((0, 0), (0, T_pad - T), (0, 0))
        x = jnp.pad(x, pad)
        noise = jnp.pad(noise, pad)

    # --- batch blocking ("parallel" axis; see header note re: 1-TC chips) ----
    if b_block is None or b_block <= 0 or B % b_block != 0:
        B_BLK = B
    else:
        B_BLK = b_block

    grid = (B // B_BLK, T_pad // T_BLK)

    kernel = functools.partial(
        _rnn_chunk_kernel,
        noise_std=float(noise_std),
        one_minus_alpha=float(1.0 - alpha),
        t_tile=t_tile)

    # Explicit scoped-VMEM budget: double-buffered streamed blocks + weights
    # + carried state + r buffer, with headroom.
    vmem_bytes = 4 * (2 * B_BLK * T_BLK * (I + H + O)   # x/noise/out blocks, x2 buf
                      + I * H + H * H + H * O + H       # weights + h0
                      + 2 * B_BLK * H                   # carried h, r
                      + B_BLK * T_BLK * H)              # r buffer
    vmem_limit = int(min(max(2 * vmem_bytes, 4 * 1024 * 1024), 64 * 1024 * 1024))

    out = pl.pallas_call(
        kernel,
        out_shape=jax.ShapeDtypeStruct((B, T_pad, O), jnp.float32),
        grid_spec=pltpu.PrefetchScalarGridSpec(
            num_scalar_prefetch=0,
            grid=grid,
            in_specs=[
                pl.BlockSpec((B_BLK, T_BLK, I), lambda b, t: (b, t, 0)),  # x
                pl.BlockSpec((B_BLK, T_BLK, H), lambda b, t: (b, t, 0)),  # noise
                pl.BlockSpec((I, H), lambda b, t: (0, 0)),                # alpha*wi
                pl.BlockSpec((H, H), lambda b, t: (0, 0)),                # alpha*w_rec
                pl.BlockSpec((H, O), lambda b, t: (0, 0)),                # wo / H
                pl.BlockSpec((1, H), lambda b, t: (0, 0)),                # h0
            ],
            out_specs=pl.BlockSpec((B_BLK, T_BLK, O), lambda b, t: (b, t, 0)),
            scratch_shapes=[
                pltpu.VMEM((B_BLK, H), jnp.float32),          # carried h
                pltpu.VMEM((B_BLK, H), jnp.float32),          # carried r
                pltpu.VMEM((B_BLK, T_BLK, H), jnp.float32),   # r buffer (chunk)
            ]),
        compiler_params=pltpu.CompilerParams(
            dimension_semantics=("parallel", "arbitrary"),
            vmem_limit_bytes=vmem_limit),
    )(x, noise, wi_a, wrec_a, wo_s, h0_2d)

    return out[:, :T, :] if T_pad != T else out


# ----------------------------------------------------------------------------
# Parameter construction mirroring HandMadeTrainableRNN.__init__ / forward
# ----------------------------------------------------------------------------
def init_handmade_rnn_params(key, hidden_size, rho=1.0):
    kwi, kwo, ka, krn = jax.random.split(key, 4)
    wi_flat = jax.random.normal(kwi, (hidden_size, 1), jnp.float32)   # (H, 1)
    wi = wi_flat.reshape(1, hidden_size)                              # wi_flat.view(1, H)
    wo = jax.random.normal(kwo, (hidden_size, 1), jnp.float32)        # (H, 1)
    A = jax.random.normal(ka, (hidden_size, 1), jnp.float32)
    A = A / jnp.linalg.norm(A)
    h0 = jnp.zeros((hidden_size,), jnp.float32)
    rec_noise = (rho / sqrt(hidden_size)) * jax.random.normal(
        krn, (hidden_size, hidden_size), jnp.float32)
    return wi_flat, wi, wo, A, h0, rec_noise


def compute_w_rec(wi_flat, wi, wo, A, rec_noise, hidden_size,
                  overlap_wi=1.0, overlap_wo=1.0, overlap_mn=1.0):
    # Mirrors the n_rec / m_rec / w_rec recompute at the top of forward().
    n_rec = (overlap_wi * hidden_size / jnp.sum(wi ** 2)) * wi_flat \
        + jnp.sqrt(overlap_mn * hidden_size) * A                      # (H, 1)
    m_rec = (overlap_wo * hidden_size / jnp.sum(wo ** 2)) * wo \
        + jnp.sqrt(overlap_mn * hidden_size) * A                      # (H, 1)
    return n_rec @ m_rec.T / hidden_size + rec_noise                  # (H, H)


# ----------------------------------------------------------------------------
# Pure-JAX reference (mirrors the PyTorch forward) for a sanity check
# ----------------------------------------------------------------------------
def reference_forward(x, noise, h0, wi, w_rec, wo, *, noise_std, alpha):
    B, T, I = x.shape
    H = w_rec.shape[0]
    h = jnp.broadcast_to(h0, (B, H))
    r = jnp.tanh(h)

    def step(carry, inp):
        h, r = carry
        x_t, n_t = inp
        h = h + noise_std * n_t + alpha * (-h + r @ w_rec + x_t @ wi)
        r = jnp.tanh(h)
        o = r @ wo / H
        return (h, r), o

    _, outs = jax.lax.scan(step, (h, r), (jnp.transpose(x, (1, 0, 2)),
                                          jnp.transpose(noise, (1, 0, 2))))
    return jnp.transpose(outs, (1, 0, 2))


# ----------------------------------------------------------------------------
if __name__ == "__main__":
    # Hyper-parameters consistent with the module (wi is (1, H) and wo is
    # (H, 1), so the effective input/output sizes are 1).
    input_size = 1
    hidden_size = 32
    output_size = 1
    noise_std = 0.05
    alpha = 0.2
    rho = 1.0
    batch = 2
    seq_len = 8

    key = jax.random.PRNGKey(0)
    kparam, kx, kn = jax.random.split(key, 3)

    wi_flat, wi, wo, A, h0, rec_noise = init_handmade_rnn_params(
        kparam, hidden_size, rho=rho)
    w_rec = compute_w_rec(wi_flat, wi, wo, A, rec_noise, hidden_size,
                          overlap_wi=1.0, overlap_wo=1.0, overlap_mn=1.0)

    x = jax.random.normal(kx, (batch, seq_len, input_size), jnp.float32)
    # torch.randn noise drawn inside forward() -> passed explicitly here.
    noise = jax.random.normal(kn, (batch, seq_len, hidden_size), jnp.float32)

    out = handmade_rnn_forward(x, noise, h0, wi, w_rec, wo,
                               noise_std=noise_std, alpha=alpha)
    out = jax.block_until_ready(out)

    ref = reference_forward(x, noise, h0, wi, w_rec, wo,
                            noise_std=noise_std, alpha=alpha)
    assert out.shape == (batch, seq_len, output_size)
    assert jnp.allclose(out, ref, atol=1e-4, rtol=1e-4), \
        float(jnp.max(jnp.abs(out - ref)))

    print("KERNEL_OK")
</pallas_src>

<mosaic_0001>
module attributes {stable_mosaic.version = 11 : i64} {
  func.func @_rnn_chunk_kernel(%arg0: i32, %arg1: i32, %arg2: memref<2x8x1xf32, #tpu.memory_space<vmem>>, %arg3: memref<2x8x32xf32, #tpu.memory_space<vmem>>, %arg4: memref<1x32xf32, #tpu.memory_space<vmem>>, %arg5: memref<32x32xf32, #tpu.memory_space<vmem>>, %arg6: memref<32x1xf32, #tpu.memory_space<vmem>>, %arg7: memref<1x32xf32, #tpu.memory_space<vmem>>, %arg8: memref<2x8x1xf32, #tpu.memory_space<vmem>>, %arg9: memref<2x32xf32, #tpu.memory_space<vmem>>, %arg10: memref<2x32xf32, #tpu.memory_space<vmem>>, %arg11: memref<2x8x32xf32, #tpu.memory_space<vmem>>) attributes {dimension_semantics = [#tpu.dimension_semantics<parallel>, #tpu.dimension_semantics<arbitrary>], iteration_bounds = array<i64: 1, 1>, scalar_prefetch = 0 : i64, scratch_operands = 3 : i64, tpu.core_type = #tpu.core_type<tc>, window_params = [{transform_indices = @transform_0, window_bounds = array<i64: 2, 8, 1>}, {transform_indices = @transform_1, window_bounds = array<i64: 2, 8, 32>}, {pipeline_mode = #tpu.pipeline_mode<synchronous>, transform_indices = @transform_2, window_bounds = array<i64: 1, 32>}, {pipeline_mode = #tpu.pipeline_mode<synchronous>, transform_indices = @transform_3, window_bounds = array<i64: 32, 32>}, {pipeline_mode = #tpu.pipeline_mode<synchronous>, transform_indices = @transform_4, window_bounds = array<i64: 32, 1>}, {pipeline_mode = #tpu.pipeline_mode<synchronous>, transform_indices = @transform_5, window_bounds = array<i64: 1, 32>}, {transform_indices = @transform_6, window_bounds = array<i64: 2, 8, 1>}]} {
    %c0_i32 = arith.constant 0 : i32
    %0 = arith.cmpi eq, %arg1, %c0_i32 : i32
    %1 = arith.extui %0 : i1 to i32
    %c0_i32_0 = arith.constant 0 : i32
    %2 = arith.cmpi ne, %1, %c0_i32_0 : i32
    scf.if %2 {
      %c0_60 = arith.constant 0 : index
      %c0_61 = arith.constant 0 : index
      %124 = vector.load %arg7[%c0_60, %c0_61] : memref<1x32xf32, #tpu.memory_space<vmem>>, vector<1x32xf32>
      %125 = vector.shape_cast %124 : vector<1x32xf32> to vector<1x32xf32>
      %126 = vector.broadcast %125 : vector<1x32xf32> to vector<2x32xf32>
      %c0_62 = arith.constant 0 : index
      %c0_63 = arith.constant 0 : index
      %127 = vector.load %arg9[%c0_62, %c0_63] : memref<2x32xf32, #tpu.memory_space<vmem>>, vector<2x32xf32>
      tpu.vector_store %arg9[%c0_62, %c0_63], %126 {strides = array<i32>} : memref<2x32xf32, #tpu.memory_space<vmem>>, vector<2x32xf32>,
      %128 = math.tanh %126 : vector<2x32xf32>
      %c0_64 = arith.constant 0 : index
      %c0_65 = arith.constant 0 : index
      %129 = vector.load %arg10[%c0_64, %c0_65] : memref<2x32xf32, #tpu.memory_space<vmem>>, vector<2x32xf32>
      tpu.vector_store %arg10[%c0_64, %c0_65], %128 {strides = array<i32>} : memref<2x32xf32, #tpu.memory_space<vmem>>, vector<2x32xf32>,
    } else {
    }
    %c0 = arith.constant 0 : index
    %c0_1 = arith.constant 0 : index
    %3 = vector.load %arg4[%c0, %c0_1] : memref<1x32xf32, #tpu.memory_space<vmem>>, vector<1x32xf32>
    %c0_2 = arith.constant 0 : index
    %c0_3 = arith.constant 0 : index
    %4 = vector.load %arg5[%c0_2, %c0_3] : memref<32x32xf32, #tpu.memory_space<vmem>>, vector<32x32xf32>
    %c0_4 = arith.constant 0 : index
    %c0_5 = arith.constant 0 : index
    %5 = vector.load %arg6[%c0_4, %c0_5] : memref<32x1xf32, #tpu.memory_space<vmem>>, vector<32x1xf32>
    %c0_6 = arith.constant 0 : index
    %c0_7 = arith.constant 0 : index
    %6 = vector.load %arg9[%c0_6, %c0_7] : memref<2x32xf32, #tpu.memory_space<vmem>>, vector<2x32xf32>
    %c0_8 = arith.constant 0 : index
    %c0_9 = arith.constant 0 : index
    %7 = vector.load %arg10[%c0_8, %c0_9] : memref<2x32xf32, #tpu.memory_space<vmem>>, vector<2x32xf32>
    %c0_i32_10 = arith.constant 0 : i32
    %c8_i32 = arith.constant 8 : i32
    %8 = arith.muli %c0_i32_10, %c8_i32 : i32
    %9 = tpu.assume_multiple %8, 8 : i32
    %c0_11 = arith.constant 0 : index
    %10 = arith.index_cast %9 : i32 to index
    %c0_12 = arith.constant 0 : index
    %11 = vector.load %arg3[%c0_11, %10, %c0_12] : memref<2x8x32xf32, #tpu.memory_space<vmem>>, vector<2x8x32xf32>
    %c0_13 = arith.constant 0 : index
    %12 = arith.index_cast %9 : i32 to index
    %c0_14 = arith.constant 0 : index
    %13 = vector.load %arg2[%c0_13, %12, %c0_14] : memref<2x8x1xf32, #tpu.memory_space<vmem>>, vector<2x8x1xf32>
    %14 = vector.shape_cast %3 : vector<1x32xf32> to vector<1x1x32xf32>
    %15 = vector.broadcast %13 : vector<2x8x1xf32> to vector<2x8x32xf32>
    %16 = vector.broadcast %14 : vector<1x1x32xf32> to vector<2x8x32xf32>
    %17 = arith.mulf %15, %16 : vector<2x8x32xf32>
    %cst = arith.constant 5.000000e-02 : f32
    %18 = vector.broadcast %cst : f32 to vector<2x8x32xf32>
    %19 = arith.mulf %18, %11 : vector<2x8x32xf32>
    %20 = arith.addf %19, %17 : vector<2x8x32xf32>
    %cst_15 = arith.constant dense<0.000000e+00> : vector<2x32xf32>
    %21 = tpu.matmul %7, %4, %cst_15 {dimension_numbers = #tpu.dot_dimension_numbers<[1], [0], [0], [1], [0, 0, 1, 1], [], []>} : vector<2x32xf32>, vector<32x32xf32>, vector<2x32xf32> -> vector<2x32xf32>
    %cst_16 = arith.constant 8.000000e-01 : f32
    %22 = vector.broadcast %cst_16 : f32 to vector<2x32xf32>
    %23 = arith.mulf %22, %6 : vector<2x32xf32>
    %24 = vector.extract_strided_slice %20 {offsets = [0, 0, 0], sizes = [2, 1, 32], strides = [1, 1, 1]} : vector<2x8x32xf32> to vector<2x1x32xf32>
    %25 = vector.shape_cast %24 : vector<2x1x32xf32> to vector<2x32xf32>
    %26 = arith.addf %23, %25 : vector<2x32xf32>
    %27 = arith.addf %26, %21 : vector<2x32xf32>
    %28 = math.tanh %27 : vector<2x32xf32>
    %29 = vector.shape_cast %28 : vector<2x32xf32> to vector<2x1x32xf32>
    %c0_i32_17 = arith.constant 0 : i32
    %30 = arith.addi %9, %c0_i32_17 : i32
    %c0_18 = arith.constant 0 : index
    %31 = arith.index_cast %30 : i32 to index
    %c0_19 = arith.constant 0 : index
    %32 = vector.load %arg11[%c0_18, %31, %c0_19] : memref<2x8x32xf32, #tpu.memory_space<vmem>>, vector<2x1x32xf32>
    tpu.vector_store %arg11[%c0_18, %31, %c0_19], %29 {strides = array<i32>} : memref<2x8x32xf32, #tpu.memory_space<vmem>>, vector<2x1x32xf32>,
    %cst_20 = arith.constant dense<0.000000e+00> : vector<2x32xf32>
    %33 = tpu.matmul %28, %4, %cst_20 {dimension_numbers = #tpu.dot_dimension_numbers<[1], [0], [0], [1], [0, 0, 1, 1], [], []>} : vector<2x32xf32>, vector<32x32xf32>, vector<2x32xf32> -> vector<2x32xf32>
    %cst_21 = arith.constant 8.000000e-01 : f32
    %34 = vector.broadcast %cst_21 : f32 to vector<2x32xf32>
    %35 = arith.mulf %34, %27 : vector<2x32xf32>
    %36 = vector.extract_strided_slice %20 {offsets = [0, 1, 0], sizes = [2, 1, 32], strides = [1, 1, 1]} : vector<2x8x32xf32> to vector<2x1x32xf32>
    %37 = vector.shape_cast %36 : vector<2x1x32xf32> to vector<2x32xf32>
    %38 = arith.addf %35, %37 : vector<2x32xf32>
    %39 = arith.addf %38, %33 : vector<2x32xf32>
    %40 = math.tanh %39 : vector<2x32xf32>
    %41 = vector.shape_cast %40 : vector<2x32xf32> to vector<2x1x32xf32>
    %c1_i32 = arith.constant 1 : i32
    %42 = arith.addi %9, %c1_i32 : i32
    %c0_22 = arith.constant 0 : index
    %43 = arith.index_cast %42 : i32 to index
    %c0_23 = arith.constant 0 : index
    %44 = vector.load %arg11[%c0_22, %43, %c0_23] : memref<2x8x32xf32, #tpu.memory_space<vmem>>, vector<2x1x32xf32>
    tpu.vector_store %arg11[%c0_22, %43, %c0_23], %41 {strides = array<i32>} : memref<2x8x32xf32, #tpu.memory_space<vmem>>, vector<2x1x32xf32>,
    %cst_24 = arith.constant dense<0.000000e+00> : vector<2x32xf32>
    %45 = tpu.matmul %40, %4, %cst_24 {dimension_numbers = #tpu.dot_dimension_numbers<[1], [0], [0], [1], [0, 0, 1, 1], [], []>} : vector<2x32xf32>, vector<32x32xf32>, vector<2x32xf32> -> vector<2x32xf32>
    %cst_25 = arith.constant 8.000000e-01 : f32
    %46 = vector.broadcast %cst_25 : f32 to vector<2x32xf32>
    %47 = arith.mulf %46, %39 : vector<2x32xf32>
    %48 = vector.extract_strided_slice %20 {offsets = [0, 2, 0], sizes = [2, 1, 32], strides = [1, 1, 1]} : vector<2x8x32xf32> to vector<2x1x32xf32>
    %49 = vector.shape_cast %48 : vector<2x1x32xf32> to vector<2x32xf32>
    %50 = arith.addf %47, %49 : vector<2x32xf32>
    %51 = arith.addf %50, %45 : vector<2x32xf32>
    %52 = math.tanh %51 : vector<2x32xf32>
    %53 = vector.shape_cast %52 : vector<2x32xf32> to vector<2x1x32xf32>
    %c2_i32 = arith.constant 2 : i32
    %54 = arith.addi %9, %c2_i32 : i32
    %c0_26 = arith.constant 0 : index
    %55 = arith.index_cast %54 : i32 to index
    %c0_27 = arith.constant 0 : index
    %56 = vector.load %arg11[%c0_26, %55, %c0_27] : memref<2x8x32xf32, #tpu.memory_space<vmem>>, vector<2x1x32xf32>
    tpu.vector_store %arg11[%c0_26, %55, %c0_27], %53 {strides = array<i32>} : memref<2x8x32xf32, #tpu.memory_space<vmem>>, vector<2x1x32xf32>,
    %cst_28 = arith.constant dense<0.000000e+00> : vector<2x32xf32>
    %57 = tpu.matmul %52, %4, %cst_28 {dimension_numbers = #tpu.dot_dimension_numbers<[1], [0], [0], [1], [0, 0, 1, 1], [], []>} : vector<2x32xf32>, vector<32x32xf32>, vector<2x32xf32> -> vector<2x32xf32>
    %cst_29 = arith.constant 8.000000e-01 : f32
    %58 = vector.broadcast %cst_29 : f32 to vector<2x32xf32>
    %59 = arith.mulf %58, %51 : vector<2x32xf32>
    %60 = vector.extract_strided_slice %20 {offsets = [0, 3, 0], sizes = [2, 1, 32], strides = [1, 1, 1]} : vector<2x8x32xf32> to vector<2x1x32xf32>
    %61 = vector.shape_cast %60 : vector<2x1x32xf32> to vector<2x32xf32>
    %62 = arith.addf %59, %61 : vector<2x32xf32>
    %63 = arith.addf %62, %57 : vector<2x32xf32>
    %64 = math.tanh %63 : vector<2x32xf32>
    %65 = vector.shape_cast %64 : vector<2x32xf32> to vector<2x1x32xf32>
    %c3_i32 = arith.constant 3 : i32
    %66 = arith.addi %9, %c3_i32 : i32
    %c0_30 = arith.constant 0 : index
    %67 = arith.index_cast %66 : i32 to index
    %c0_31 = arith.constant 0 : index
    %68 = vector.load %arg11[%c0_30, %67, %c0_31] : memref<2x8x32xf32, #tpu.memory_space<vmem>>, vector<2x1x32xf32>
    tpu.vector_store %arg11[%c0_30, %67, %c0_31], %65 {strides = array<i32>} : memref<2x8x32xf32, #tpu.memory_space<vmem>>, vector<2x1x32xf32>,
    %cst_32 = arith.constant dense<0.000000e+00> : vector<2x32xf32>
    %69 = tpu.matmul %64, %4, %cst_32 {dimension_numbers = #tpu.dot_dimension_numbers<[1], [0], [0], [1], [0, 0, 1, 1], [], []>} : vector<2x32xf32>, vector<32x32xf32>, vector<2x32xf32> -> vector<2x32xf32>
    %cst_33 = arith.constant 8.000000e-01 : f32
    %70 = vector.broadcast %cst_33 : f32 to vector<2x32xf32>
    %71 = arith.mulf %70, %63 : vector<2x32xf32>
    %72 = vector.extract_strided_slice %20 {offsets = [0, 4, 0], sizes = [2, 1, 32], strides = [1, 1, 1]} : vector<2x8x32xf32> to vector<2x1x32xf32>
    %73 = vector.shape_cast %72 : vector<2x1x32xf32> to vector<2x32xf32>
    %74 = arith.addf %71, %73 : vector<2x32xf32>
    %75 = arith.addf %74, %69 : vector<2x32xf32>
    %76 = math.tanh %75 : vector<2x32xf32>
    %77 = vector.shape_cast %76 : vector<2x32xf32> to vector<2x1x32xf32>
    %c4_i32 = arith.constant 4 : i32
    %78 = arith.addi %9, %c4_i32 : i32
    %c0_34 = arith.constant 0 : index
    %79 = arith.index_cast %78 : i32 to index
    %c0_35 = arith.constant 0 : index
    %80 = vector.load %arg11[%c0_34, %79, %c0_35] : memref<2x8x32xf32, #tpu.memory_space<vmem>>, vector<2x1x32xf32>
    tpu.vector_store %arg11[%c0_34, %79, %c0_35], %77 {strides = array<i32>} : memref<2x8x32xf32, #tpu.memory_space<vmem>>, vector<2x1x32xf32>,
    %cst_36 = arith.constant dense<0.000000e+00> : vector<2x32xf32>
    %81 = tpu.matmul %76, %4, %cst_36 {dimension_numbers = #tpu.dot_dimension_numbers<[1], [0], [0], [1], [0, 0, 1, 1], [], []>} : vector<2x32xf32>, vector<32x32xf32>, vector<2x32xf32> -> vector<2x32xf32>
    %cst_37 = arith.constant 8.000000e-01 : f32
    %82 = vector.broadcast %cst_37 : f32 to vector<2x32xf32>
    %83 = arith.mulf %82, %75 : vector<2x32xf32>
    %84 = vector.extract_strided_slice %20 {offsets = [0, 5, 0], sizes = [2, 1, 32], strides = [1, 1, 1]} : vector<2x8x32xf32> to vector<2x1x32xf32>
    %85 = vector.shape_cast %84 : vector<2x1x32xf32> to vector<2x32xf32>
    %86 = arith.addf %83, %85 : vector<2x32xf32>
    %87 = arith.addf %86, %81 : vector<2x32xf32>
    %88 = math.tanh %87 : vector<2x32xf32>
    %89 = vector.shape_cast %88 : vector<2x32xf32> to vector<2x1x32xf32>
    %c5_i32 = arith.constant 5 : i32
    %90 = arith.addi %9, %c5_i32 : i32
    %c0_38 = arith.constant 0 : index
    %91 = arith.index_cast %90 : i32 to index
    %c0_39 = arith.constant 0 : index
    %92 = vector.load %arg11[%c0_38, %91, %c0_39] : memref<2x8x32xf32, #tpu.memory_space<vmem>>, vector<2x1x32xf32>
    tpu.vector_store %arg11[%c0_38, %91, %c0_39], %89 {strides = array<i32>} : memref<2x8x32xf32, #tpu.memory_space<vmem>>, vector<2x1x32xf32>,
    %cst_40 = arith.constant dense<0.000000e+00> : vector<2x32xf32>
    %93 = tpu.matmul %88, %4, %cst_40 {dimension_numbers = #tpu.dot_dimension_numbers<[1], [0], [0], [1], [0, 0, 1, 1], [], []>} : vector<2x32xf32>, vector<32x32xf32>, vector<2x32xf32> -> vector<2x32xf32>
    %cst_41 = arith.constant 8.000000e-01 : f32
    %94 = vector.broadcast %cst_41 : f32 to vector<2x32xf32>
    %95 = arith.mulf %94, %87 : vector<2x32xf32>
    %96 = vector.extract_strided_slice %20 {offsets = [0, 6, 0], sizes = [2, 1, 32], strides = [1, 1, 1]} : vector<2x8x32xf32> to vector<2x1x32xf32>
    %97 = vector.shape_cast %96 : vector<2x1x32xf32> to vector<2x32xf32>
    %98 = arith.addf %95, %97 : vector<2x32xf32>
    %99 = arith.addf %98, %93 : vector<2x32xf32>
    %100 = math.tanh %99 : vector<2x32xf32>
    %101 = vector.shape_cast %100 : vector<2x32xf32> to vector<2x1x32xf32>
    %c6_i32 = arith.constant 6 : i32
    %102 = arith.addi %9, %c6_i32 : i32
    %c0_42 = arith.constant 0 : index
    %103 = arith.index_cast %102 : i32 to index
    %c0_43 = arith.constant 0 : index
    %104 = vector.load %arg11[%c0_42, %103, %c0_43] : memref<2x8x32xf32, #tpu.memory_space<vmem>>, vector<2x1x32xf32>
    tpu.vector_store %arg11[%c0_42, %103, %c0_43], %101 {strides = array<i32>} : memref<2x8x32xf32, #tpu.memory_space<vmem>>, vector<2x1x32xf32>,
    %cst_44 = arith.constant dense<0.000000e+00> : vector<2x32xf32>
    %105 = tpu.matmul %100, %4, %cst_44 {dimension_numbers = #tpu.dot_dimension_numbers<[1], [0], [0], [1], [0, 0, 1, 1], [], []>} : vector<2x32xf32>, vector<32x32xf32>, vector<2x32xf32> -> vector<2x32xf32>
    %cst_45 = arith.constant 8.000000e-01 : f32
    %106 = vector.broadcast %cst_45 : f32 to vector<2x32xf32>
    %107 = arith.mulf %106, %99 : vector<2x32xf32>
    %108 = vector.extract_strided_slice %20 {offsets = [0, 7, 0], sizes = [2, 1, 32], strides = [1, 1, 1]} : vector<2x8x32xf32> to vector<2x1x32xf32>
    %109 = vector.shape_cast %108 : vector<2x1x32xf32> to vector<2x32xf32>
    %110 = arith.addf %107, %109 : vector<2x32xf32>
    %111 = arith.addf %110, %105 : vector<2x32xf32>
    %112 = math.tanh %111 : vector<2x32xf32>
    %113 = vector.shape_cast %112 : vector<2x32xf32> to vector<2x1x32xf32>
    %c7_i32 = arith.constant 7 : i32
    %114 = arith.addi %9, %c7_i32 : i32
    %c0_46 = arith.constant 0 : index
    %115 = arith.index_cast %114 : i32 to index
    %c0_47 = arith.constant 0 : index
    %116 = vector.load %arg11[%c0_46, %115, %c0_47] : memref<2x8x32xf32, #tpu.memory_space<vmem>>, vector<2x1x32xf32>
    tpu.vector_store %arg11[%c0_46, %115, %c0_47], %113 {strides = array<i32>} : memref<2x8x32xf32, #tpu.memory_space<vmem>>, vector<2x1x32xf32>,
    %c1_i32_48 = arith.constant 1 : i32
    %c0_49 = arith.constant 0 : index
    %c0_50 = arith.constant 0 : index
    %117 = vector.load %arg9[%c0_49, %c0_50] : memref<2x32xf32, #tpu.memory_space<vmem>>, vector<2x32xf32>
    tpu.vector_store %arg9[%c0_49, %c0_50], %111 {strides = array<i32>} : memref<2x32xf32, #tpu.memory_space<vmem>>, vector<2x32xf32>,
    %c0_51 = arith.constant 0 : index
    %c0_52 = arith.constant 0 : index
    %118 = vector.load %arg10[%c0_51, %c0_52] : memref<2x32xf32, #tpu.memory_space<vmem>>, vector<2x32xf32>
    tpu.vector_store %arg10[%c0_51, %c0_52], %112 {strides = array<i32>} : memref<2x32xf32, #tpu.memory_space<vmem>>, vector<2x32xf32>,
    %c0_53 = arith.constant 0 : index
    %c0_54 = arith.constant 0 : index
    %c0_55 = arith.constant 0 : index
    %119 = vector.load %arg11[%c0_53, %c0_54, %c0_55] : memref<2x8x32xf32, #tpu.memory_space<vmem>>, vector<2x8x32xf32>
    %120 = vector.shape_cast %119 : vector<2x8x32xf32> to vector<16x32xf32>
    %cst_56 = arith.constant dense<0.000000e+00> : vector<16x1xf32>
    %121 = tpu.matmul %120, %5, %cst_56 {dimension_numbers = #tpu.dot_dimension_numbers<[1], [0], [0], [1], [0, 0, 1, 1], [], []>} : vector<16x32xf32>, vector<32x1xf32>, vector<16x1xf32> -> vector<16x1xf32>
    %122 = vector.shape_cast %121 : vector<16x1xf32> to vector<2x8x1xf32>
    %c0_57 = arith.constant 0 : index
    %c0_58 = arith.constant 0 : index
    %c0_59 = arith.constant 0 : index
    %123 = vector.load %arg8[%c0_57, %c0_58, %c0_59] : memref<2x8x1xf32, #tpu.memory_space<vmem>>, vector<2x8x1xf32>
    tpu.vector_store %arg8[%c0_57, %c0_58, %c0_59], %122 {strides = array<i32>} : memref<2x8x1xf32, #tpu.memory_space<vmem>>, vector<2x8x1xf32>,
    return
  }
  func.func @transform_0(%arg0: i32, %arg1: i32) -> (i32, i32, i32) {
    %c0_i32 = arith.constant 0 : i32
    %c0_i32_0 = arith.constant 0 : i32
    return %arg0, %arg1, %c0_i32 : i32, i32, i32
  }
  func.func @transform_1(%arg0: i32, %arg1: i32) -> (i32, i32, i32) {
    %c0_i32 = arith.constant 0 : i32
    %c0_i32_0 = arith.constant 0 : i32
    return %arg0, %arg1, %c0_i32 : i32, i32, i32
  }
  func.func @transform_2(%arg0: i32, %arg1: i32) -> (i32, i32) {
    %c0_i32 = arith.constant 0 : i32
    %c0_i32_0 = arith.constant 0 : i32
    %c0_i32_1 = arith.constant 0 : i32
    return %c0_i32, %c0_i32_0 : i32, i32
  }
  func.func @transform_3(%arg0: i32, %arg1: i32) -> (i32, i32) {
    %c0_i32 = arith.constant 0 : i32
    %c0_i32_0 = arith.constant 0 : i32
    %c0_i32_1 = arith.constant 0 : i32
    return %c0_i32, %c0_i32_0 : i32, i32
  }
  func.func @transform_4(%arg0: i32, %arg1: i32) -> (i32, i32) {
    %c0_i32 = arith.constant 0 : i32
    %c0_i32_0 = arith.constant 0 : i32
    %c0_i32_1 = arith.constant 0 : i32
    return %c0_i32, %c0_i32_0 : i32, i32
  }
  func.func @transform_5(%arg0: i32, %arg1: i32) -> (i32, i32) {
    %c0_i32 = arith.constant 0 : i32
    %c0_i32_0 = arith.constant 0 : i32
    %c0_i32_1 = arith.constant 0 : i32
    return %c0_i32, %c0_i32_0 : i32, i32
  }
  func.func @transform_6(%arg0: i32, %arg1: i32) -> (i32, i32, i32) {
    %c0_i32 = arith.constant 0 : i32
    %c0_i32_0 = arith.constant 0 : i32
    return %arg0, %arg1, %c0_i32 : i32, i32, i32
  }
}

</mosaic_0001>

<llo_original>
// kernel: tpu_custom_call.1
$region0: #{tpu_custom_call.1}
  #allocation0 [shape = 'u32[]', space=smem, size = 0x4, offset = 0x4, fixed_abs, tag = 'smem constant byte address 0x4 - core index']
  #allocation1 [shape = 'u32[144,128]{1,0:T(1,128)}', space=vmem, size = 0x12000, scoped, tag = 'internal scratch']
  #allocation2 [shape = 'f32[2,32]{1,0:T(2,128)}', space=vmem, size = 0x400, scoped, tag = 'scratch operand']
  #allocation3 [shape = 'f32[2,32]{1,0:T(2,128)}', space=vmem, size = 0x400, scoped, tag = 'scratch operand']
  #allocation4 [shape = 'f32[2,8,32]{2,1,0:T(8,128)}', space=vmem, size = 0x2000, scoped, tag = 'scratch operand']
  %s0 = inlined_call_operand.vmem [shape: f32[2,8,1], index: 0, kind: input, shape index: {}]
  %s1 = inlined_call_operand.vmem [shape: f32[2,8,32], index: 1, kind: input, shape index: {}]
  %s2 = inlined_call_operand.vmem [shape: f32[1,32], index: 2, kind: input, shape index: {}]
  %s3 = inlined_call_operand.vmem [shape: f32[32,32], index: 3, kind: input, shape index: {}]
  %s4 = inlined_call_operand.vmem [shape: f32[32,1], index: 4, kind: input, shape index: {}]
  %s5 = inlined_call_operand.vmem [shape: f32[1,32], index: 5, kind: input, shape index: {}]
  %s6 = inlined_call_operand.vmem [shape: f32[2,8,1], index: 6, kind: output, shape index: {}]
  %s7 = sld [smem:[#allocation0]]
  $region38: #{tpu_custom_call.1} parent=0
    _
  %s9 = ssub.s32 1, %s7
  %s10 = scalar_select 0, %s9, %s7
  // Predicated region
  $region2: #{tpu_custom_call.1} parent=0 // pred_check
    _
  $region3: #{tpu_custom_call.1} parent=0 // pred_check_branch
    %12 = sbr.rel (0) target = $region5
  $region4: #{tpu_custom_call.1} parent=0 // pred_region
    _
  $region5: #{tpu_custom_call.1} parent=0 // pred_fallthru
    _
  // Predicated region
  $region6: #{tpu_custom_call.1} parent=0 // pred_check
    _
  $region7: #{tpu_custom_call.1} parent=0 // pred_check_branch
    %14 = sbr.rel (0) target = $region9
  $region8: #{tpu_custom_call.1} parent=0 // pred_region
    _
  $region9: #{tpu_custom_call.1} parent=0 // pred_fallthru
    _
  // Predicated region
  $region10: #{tpu_custom_call.1} parent=0 // pred_check
    _
  $region11: #{tpu_custom_call.1} parent=0 // pred_check_branch
    %16 = sbr.rel (0) target = $region13
  $region12: #{tpu_custom_call.1} parent=0 // pred_region
    _
  $region13: #{tpu_custom_call.1} parent=0 // pred_fallthru
    _
  // Predicated region
  $region14: #{tpu_custom_call.1} parent=0 // pred_check
    _
  $region15: #{tpu_custom_call.1} parent=0 // pred_check_branch
    %18 = sbr.rel (0) target = $region17
  $region16: #{tpu_custom_call.1} parent=0 // pred_region
    _
  $region17: #{tpu_custom_call.1} parent=0 // pred_fallthru
    _
  // Predicated region
  $region18: #{tpu_custom_call.1} parent=0 // pred_check
    _
  $region19: #{tpu_custom_call.1} parent=0 // pred_check_branch
    %20 = sbr.rel (0) target = $region21
  $region20: #{tpu_custom_call.1} parent=0 // pred_region
    _
  $region21: #{tpu_custom_call.1} parent=0 // pred_fallthru
    _
  // Predicated region
  $region22: #{tpu_custom_call.1} parent=0 // pred_check
    _
  $region23: #{tpu_custom_call.1} parent=0 // pred_check_branch
    %22 = sbr.rel (0) target = $region25
  $region24: #{tpu_custom_call.1} parent=0 // pred_region
    _
  $region25: #{tpu_custom_call.1} parent=0 // pred_fallthru
    _
  %p23 = scmp.eq.s32.totalorder 0, 0
  // Predicated region
  $region26: #{tpu_custom_call.1} parent=0 // pred_check
    %p24 = pneg %p23
  $region27: #{tpu_custom_call.1} parent=0 // pred_check_branch
    %26 = sbr.rel (%p24) target = $region29
  $region28: #{tpu_custom_call.1} parent=0 // pred_region
    %v27 = vld [vmem:[%s5] sm:$0x1]
    %v29 = vlaneseq
    %v30 = vshrl.u32 %v29, 7
    %v31 = vsub.s32 0, %v30
    %v32 = vrot.slane %v27, %v31
    %vm34 = vcmask 254976
    %35 = vst.msk [vmem:[#allocation2] sm:$0x3] %vm34, %v32
    %v36 = vtanh.pop %v32
    %37 = vst.msk [vmem:[#allocation3] sm:$0x3] %vm34, %v36
  $region29: #{tpu_custom_call.1} parent=0 // pred_fallthru
    _
  %v38 = vld [vmem:[%s2] sm:$0x1]
  %v39 = vld [vmem:[%s3] sm:$0xff]
  %v40 = vld [vmem:[%s3 + $0x8] sm:$0xff]
  %v41 = vld [vmem:[%s3 + $0x10] sm:$0xff]
  %v42 = vld [vmem:[%s3 + $0x18] sm:$0xff]
  %v43 = vld [vmem:[%s4] sm:$0xff]
  %v44 = vld [vmem:[%s4 + $0x8] sm:$0xff]
  %v45 = vld [vmem:[%s4 + $0x10] sm:$0xff]
  %v46 = vld [vmem:[%s4 + $0x18] sm:$0xff]
  %v47 = vld [vmem:[#allocation2] sm:$0x3]
  %v48 = vld [vmem:[#allocation3] sm:$0x3]
  %v49 = vld [vmem:[%s1] sm:$0xff]
  %v50 = vld [vmem:[%s1 + $0x8] sm:$0xff]
  %v51 = vld [vmem:[%s0] sm:$0xff]
  %v52 = vld [vmem:[%s0 + $0x8] sm:$0xff]
  %54 = vset.pattern.permute.xlu0 0
  %55 = vperm.xlu0 %54, %v51
  %v56 = vpop.permute.xlu0 %55
  %59 = vset.pattern.permute.xlu0 0
  %60 = vperm.xlu0 %59, %v52
  %v61 = vpop.permute.xlu0 %60
  %v64 = vlaneseq
  %v65 = vshrl.u32 %v64, 7
  %v66 = vsub.s32 0, %v65
  %v67 = vrot.slane %v38, %v66
  %v69 = vmul.f32 %v56, %v67
  %v70 = vmul.f32 %v61, %v67
  %v71 = vmul.f32 %v49, 0.05
  %v72 = vmul.f32 %v50, 0.05
  %v73 = vadd.f32 %v71, %v69
  %v74 = vadd.f32 %v72, %v70
  %vm75 = vcmask 261120
  %v77 = vsel %vm75, %v48, 0
  %79 = vmatprep.subr.mxu0 0.0
  %80 = vmatpush1.msra.mxu0 %v39
  %81 = vmatprep.subr.mxu0 0.0
  %82 = vmatpush1.msra.mxu0 %v40
  %83 = vmatprep.subr.mxu0 0.0
  %84 = vmatpush1.msra.mxu0 %v41
  %85 = vmatprep.subr.mxu0 0.0
  %86 = vmatpush1.msra.mxu0 %v42
  %87 = vmatprep.subr.mxu0 0.0
  %88 = vmatpush1.msra.mxu0 0.0
  %89 = vmatprep.subr.mxu0 0.0
  %90 = vmatpush1.msra.mxu0 0.0
  %91 = vmatprep.subr.mxu0 0.0
  %92 = vmatpush1.msra.mxu0 0.0
  %93 = vmatprep.subr.mxu0 0.0
  %94 = vmatpush1.msra.mxu0 0.0
  %95 = vmatprep.subr.mxu0 0.0
  %96 = vmatpush1.msra.mxu0 0.0
  %97 = vmatprep.subr.mxu0 0.0
  %98 = vmatpush1.msra.mxu0 0.0
  %99 = vmatprep.subr.mxu0 0.0
  %100 = vmatpush1.msra.mxu0 0.0
  %101 = vmatprep.subr.mxu0 0.0
  %102 = vmatpush1.msra.mxu0 0.0
  %103 = vmatprep.subr.mxu0 0.0
  %104 = vmatpush1.msra.mxu0 0.0
  %105 = vmatprep.subr.mxu0 0.0
  %106 = vmatpush1.msra.mxu0 0.0
  %107 = vmatprep.subr.mxu0 0.0
  %108 = vmatpush1.msra.mxu0 0.0
  %109 = vmatprep.subr.mxu0 0.0
  %110 = vmatpush1.msra.mxu0 0.0
  %111 = vmatprep.subr.mxu0 0.0
  %112 = vmatpush1.msra.mxu0 0.0
  %113 = vmatprep.subr.mxu0 0.0
  %114 = vmatpush1.msra.mxu0 0.0
  %115 = vmatprep.subr.mxu0 0.0
  %116 = vmatpush1.msra.mxu0 0.0
  %117 = vmatprep.subr.mxu0 0.0
  %118 = vmatpush1.msra.mxu0 0.0
  %119 = vmatprep.subr.mxu0 0.0
  %120 = vmatpush1.msra.mxu0 0.0
  %121 = vmatprep.subr.mxu0 0.0
  %122 = vmatpush1.msra.mxu0 0.0
  %123 = vmatprep.subr.mxu0 0.0
  %124 = vmatpush1.msra.mxu0 0.0
  %125 = vmatprep.subr.mxu0 0.0
  %126 = vmatpush1.msra.mxu0 0.0
  %127 = vmatprep.subr.mxu0 0.0
  %128 = vmatpush1.msra.mxu0 0.0
  %129 = vmatprep.subr.mxu0 0.0
  %130 = vmatpush1.msra.mxu0 0.0
  %131 = vmatprep.subr.mxu0 0.0
  %132 = vmatpush1.msra.mxu0 0.0
  %133 = vmatprep.subr.mxu0 0.0
  %134 = vmatpush1.msra.mxu0 0.0
  %135 = vmatprep.subr.mxu0 0.0
  %136 = vmatpush1.msra.mxu0 0.0
  %137 = vmatprep.subr.mxu0 0.0
  %138 = vmatpush1.msra.mxu0 0.0
  %139 = vmatprep.subr.mxu0 0.0
  %140 = vmatpush1.msra.mxu0 0.0
  %141 = vmatprep.subr.mxu0 0.0
  %142 = vmatpush1.msra.mxu0 0.0
  %143 = vmatprep.mubr.f32.mxu0 0.0
  %144 = vmatmul.mubr.f32.gmra.mrb[0].mxu0 %v77
  %v145 = vpop.f32.mrb[0].mxu0
  %v146 = vadd.f32 0.0, %v145
  %v147 = vpop.f32.mrb[0].mxu0
  %148 = vdwg.mxu0
  %v149 = vmul.f32 %v47, 0.8
  %v152 = vrot.slane %v74, 7
  %vm153 = vcmask 1041409
  %v154 = vsel %vm153, %v152, %v73
  %v156 = vadd.f32 %v149, %v154
  %v157 = vadd.f32 %v156, %v146
  %v158 = vtanh.pop %v157
  %v161 = vunpack.c.l.s4 1966171168
  %v162 = vunpack.c.0.s8 %v161
  %v163 = vlaneseq
  %v164 = vshrl.u32 %v163, 7
  %v165 = vsub.s32 %v162, %v164
  %v166 = vrot.slane %v158, %v165
  %v167 = vcombine.high %v166, %v166
  %v169 = vunpack.c.l.s4 1966171168
  %v170 = vunpack.c.0.s8 %v169
  %v171 = vlaneseq
  %v172 = vshrl.u32 %v171, 7
  %v173 = vsub.s32 %v170, %v172
  %v174 = vrot.slane %v166, %v173
  %v176 = vunpack.c.l.s4 1966171168
  %v177 = vunpack.c.0.s8 %v176
  %v178 = vlaneseq
  %v179 = vshrl.u32 %v178, 7
  %v180 = vsub.s32 %v177, %v179
  %v181 = vrot.slane %v167, %v180
  %vm184 = vcmask 253952
  %185 = vst.msk [vmem:[#allocation4] sm:$0x1] %vm184, %v174
  %186 = vst.msk [vmem:[#allocation4 + $0x8] sm:$0x1] %vm184, %v181
  %v187 = vsel %vm75, %v158, 0
  %189 = vmatprep.subr.mxu0 0.0
  %190 = vmatpush1.msra.mxu0 %v39
  %191 = vmatprep.subr.mxu0 0.0
  %192 = vmatpush1.msra.mxu0 %v40
  %193 = vmatprep.subr.mxu0 0.0
  %194 = vmatpush1.msra.mxu0 %v41
  %195 = vmatprep.subr.mxu0 0.0
  %196 = vmatpush1.msra.mxu0 %v42
  %197 = vmatprep.subr.mxu0 0.0
  %198 = vmatpush1.msra.mxu0 0.0
  %199 = vmatprep.subr.mxu0 0.0
  %200 = vmatpush1.msra.mxu0 0.0
  %201 = vmatprep.subr.mxu0 0.0
  %202 = vmatpush1.msra.mxu0 0.0
  %203 = vmatprep.subr.mxu0 0.0
  %204 = vmatpush1.msra.mxu0 0.0
  %205 = vmatprep.subr.mxu0 0.0
  %206 = vmatpush1.msra.mxu0 0.0
  %207 = vmatprep.subr.mxu0 0.0
  %208 = vmatpush1.msra.mxu0 0.0
  %209 = vmatprep.subr.mxu0 0.0
  %210 = vmatpush1.msra.mxu0 0.0
  %211 = vmatprep.subr.mxu0 0.0
  %212 = vmatpush1.msra.mxu0 0.0
  %213 = vmatprep.subr.mxu0 0.0
  %214 = vmatpush1.msra.mxu0 0.0
  %215 = vmatprep.subr.mxu0 0.0
  %216 = vmatpush1.msra.mxu0 0.0
  %217 = vmatprep.subr.mxu0 0.0
  %218 = vmatpush1.msra.mxu0 0.0
  %219 = vmatprep.subr.mxu0 0.0
  %220 = vmatpush1.msra.mxu0 0.0
  %221 = vmatprep.subr.mxu0 0.0
  %222 = vmatpush1.msra.mxu0 0.0
  %223 = vmatprep.subr.mxu0 0.0
  %224 = vmatpush1.msra.mxu0 0.0
  %225 = vmatprep.subr.mxu0 0.0
  %226 = vmatpush1.msra.mxu0 0.0
  %227 = vmatprep.subr.mxu0 0.0
  %228 = vmatpush1.msra.mxu0 0.0
  %229 = vmatprep.subr.mxu0 0.0
  %230 = vmatpush1.msra.mxu0 0.0
  %231 = vmatprep.subr.mxu0 0.0
  %232 = vmatpush1.msra.mxu0 0.0
  %233 = vmatprep.subr.mxu0 0.0
  %234 = vmatpush1.msra.mxu0 0.0
  %235 = vmatprep.subr.mxu0 0.0
  %236 = vmatpush1.msra.mxu0 0.0
  %237 = vmatprep.subr.mxu0 0.0
  %238 = vmatpush1.msra.mxu0 0.0
  %239 = vmatprep.subr.mxu0 0.0
  %240 = vmatpush1.msra.mxu0 0.0
  %241 = vmatprep.subr.mxu0 0.0
  %242 = vmatpush1.msra.mxu0 0.0
  %243 = vmatprep.subr.mxu0 0.0
  %244 = vmatpush1.msra.mxu0 0.0
  %245 = vmatprep.subr.mxu0 0.0
  %246 = vmatpush1.msra.mxu0 0.0
  %247 = vmatprep.subr.mxu0 0.0
  %248 = vmatpush1.msra.mxu0 0.0
  %249 = vmatprep.subr.mxu0 0.0
  %250 = vmatpush1.msra.mxu0 0.0
  %251 = vmatprep.subr.mxu0 0.0
  %252 = vmatpush1.msra.mxu0 0.0
  %253 = vmatprep.mubr.f32.mxu0 0.0
  %254 = vmatmul.mubr.f32.gmra.mrb[0].mxu0 %v187
  %v255 = vpop.f32.mrb[0].mxu0
  %v256 = vadd.f32 0.0, %v255
  %v257 = vpop.f32.mrb[0].mxu0
  %258 = vdwg.mxu0
  %v259 = vmul.f32 %v157, 0.8
  %v260 = vrot.slane %v73, 1
  %v261 = vsel %vm153, %v74, %v260
  %v263 = vadd.f32 %v259, %v261
  %v264 = vadd.f32 %v263, %v256
  %v265 = vtanh.pop %v264
  %v268 = vunpack.c.l.s4 1966171168
  %v269 = vunpack.c.0.s8 %v268
  %v270 = vlaneseq
  %v271 = vshrl.u32 %v270, 7
  %v272 = vsub.s32 %v269, %v271
  %v273 = vrot.slane %v265, %v272
  %v274 = vcombine.high %v273, %v273
  %v276 = vunpack.c.l.s4 1966171168
  %v277 = vunpack.c.0.s8 %v276
  %v278 = vlaneseq
  %v279 = vshrl.u32 %v278, 7
  %v280 = vsub.s32 %v277, %v279
  %v281 = vrot.slane %v273, %v280
  %v283 = vunpack.c.l.s4 1966171168
  %v284 = vunpack.c.0.s8 %v283
  %v285 = vlaneseq
  %v286 = vshrl.u32 %v285, 7
  %v287 = vsub.s32 %v284, %v286
  %v288 = vrot.slane %v274, %v287
  %s291 = sadd.s32 0, 1
  %s292 = scalar_lea.vmem [#allocation4], %s291
  %293 = vst.msk [vmem:[%s292] sm:$0x1] %vm184, %v281
  %294 = vst.msk [vmem:[%s292 + $0x8] sm:$0x1] %vm184, %v288
  %v295 = vsel %vm75, %v265, 0
  %297 = vmatprep.subr.mxu0 0.0
  %298 = vmatpush1.msra.mxu0 %v39
  %299 = vmatprep.subr.mxu0 0.0
  %300 = vmatpush1.msra.mxu0 %v40
  %301 = vmatprep.subr.mxu0 0.0
  %302 = vmatpush1.msra.mxu0 %v41
  %303 = vmatprep.subr.mxu0 0.0
  %304 = vmatpush1.msra.mxu0 %v42
  %305 = vmatprep.subr.mxu0 0.0
  %306 = vmatpush1.msra.mxu0 0.0
  %307 = vmatprep.subr.mxu0 0.0
  %308 = vmatpush1.msra.mxu0 0.0
  %309 = vmatprep.subr.mxu0 0.0
  %310 = vmatpush1.msra.mxu0 0.0
  %311 = vmatprep.subr.mxu0 0.0
  %312 = vmatpush1.msra.mxu0 0.0
  %313 = vmatprep.subr.mxu0 0.0
  %314 = vmatpush1.msra.mxu0 0.0
  %315 = vmatprep.subr.mxu0 0.0
  %316 = vmatpush1.msra.mxu0 0.0
  %317 = vmatprep.subr.mxu0 0.0
  %318 = vmatpush1.msra.mxu0 0.0
  %319 = vmatprep.subr.mxu0 0.0
  %320 = vmatpush1.msra.mxu0 0.0
  %321 = vmatprep.subr.mxu0 0.0
  %322 = vmatpush1.msra.mxu0 0.0
  %323 = vmatprep.subr.mxu0 0.0
  %324 = vmatpush1.msra.mxu0 0.0
  %325 = vmatprep.subr.mxu0 0.0
  %326 = vmatpush1.msra.mxu0 0.0
  %327 = vmatprep.subr.mxu0 0.0
  %328 = vmatpush1.msra.mxu0 0.0
  %329 = vmatprep.subr.mxu0 0.0
  %330 = vmatpush1.msra.mxu0 0.0
  %331 = vmatprep.subr.mxu0 0.0
  %332 = vmatpush1.msra.mxu0 0.0
  %333 = vmatprep.subr.mxu0 0.0
  %334 = vmatpush1.msra.mxu0 0.0
  %335 = vmatprep.subr.mxu0 0.0
  %336 = vmatpush1.msra.mxu0 0.0
  %337 = vmatprep.subr.mxu0 0.0
  %338 = vmatpush1.msra.mxu0 0.0
  %339 = vmatprep.subr.mxu0 0.0
  %340 = vmatpush1.msra.mxu0 0.0
  %341 = vmatprep.subr.mxu0 0.0
  %342 = vmatpush1.msra.mxu0 0.0
  %343 = vmatprep.subr.mxu0 0.0
  %344 = vmatpush1.msra.mxu0 0.0
  %345 = vmatprep.subr.mxu0 0.0
  %346 = vmatpush1.msra.mxu0 0.0
  %347 = vmatprep.subr.mxu0 0.0
  %348 = vmatpush1.msra.mxu0 0.0
  %349 = vmatprep.subr.mxu0 0.0
  %350 = vmatpush1.msra.mxu0 0.0
  %351 = vmatprep.subr.mxu0 0.0
  %352 = vmatpush1.msra.mxu0 0.0
  %353 = vmatprep.subr.mxu0 0.0
  %354 = vmatpush1.msra.mxu0 0.0
  %355 = vmatprep.subr.mxu0 0.0
  %356 = vmatpush1.msra.mxu0 0.0
  %357 = vmatprep.subr.mxu0 0.0
  %358 = vmatpush1.msra.mxu0 0.0
  %359 = vmatprep.subr.mxu0 0.0
  %360 = vmatpush1.msra.mxu0 0.0
  %361 = vmatprep.mubr.f32.mxu0 0.0
  %362 = vmatmul.mubr.f32.gmra.mrb[0].mxu0 %v295
  %v363 = vpop.f32.mrb[0].mxu0
  %v364 = vadd.f32 0.0, %v363
  %v365 = vpop.f32.mrb[0].mxu0
  %366 = vdwg.mxu0
  %v367 = vmul.f32 %v264, 0.8
  %v368 = vrot.slane %v73, 2
  %v369 = vrot.slane %v74, 1
  %v370 = vsel %vm153, %v369, %v368
  %v372 = vadd.f32 %v367, %v370
  %v373 = vadd.f32 %v372, %v364
  %v374 = vtanh.pop %v373
  %v377 = vunpack.c.l.s4 1966171168
  %v378 = vunpack.c.0.s8 %v377
  %v379 = vlaneseq
  %v380 = vshrl.u32 %v379, 7
  %v381 = vsub.s32 %v378, %v380
  %v382 = vrot.slane %v374, %v381
  %v383 = vcombine.high %v382, %v382
  %v385 = vunpack.c.l.s4 1966171168
  %v386 = vunpack.c.0.s8 %v385
  %v387 = vlaneseq
  %v388 = vshrl.u32 %v387, 7
  %v389 = vsub.s32 %v386, %v388
  %v390 = vrot.slane %v382, %v389
  %v392 = vunpack.c.l.s4 1966171168
  %v393 = vunpack.c.0.s8 %v392
  %v394 = vlaneseq
  %v395 = vshrl.u32 %v394, 7
  %v396 = vsub.s32 %v393, %v395
  %v397 = vrot.slane %v383, %v396
  %s400 = sadd.s32 0, 2
  %s401 = scalar_lea.vmem [#allocation4], %s400
  %402 = vst.msk [vmem:[%s401] sm:$0x1] %vm184, %v390
  %403 = vst.msk [vmem:[%s401 + $0x8] sm:$0x1] %vm184, %v397
  %v404 = vsel %vm75, %v374, 0
  %406 = vmatprep.subr.mxu0 0.0
  %407 = vmatpush1.msra.mxu0 %v39
  %408 = vmatprep.subr.mxu0 0.0
  %409 = vmatpush1.msra.mxu0 %v40
  %410 = vmatprep.subr.mxu0 0.0
  %411 = vmatpush1.msra.mxu0 %v41
  %412 = vmatprep.subr.mxu0 0.0
  %413 = vmatpush1.msra.mxu0 %v42
  %414 = vmatprep.subr.mxu0 0.0
  %415 = vmatpush1.msra.mxu0 0.0
  %416 = vmatprep.subr.mxu0 0.0
  %417 = vmatpush1.msra.mxu0 0.0
  %418 = vmatprep.subr.mxu0 0.0
  %419 = vmatpush1.msra.mxu0 0.0
  %420 = vmatprep.subr.mxu0 0.0
  %421 = vmatpush1.msra.mxu0 0.0
  %422 = vmatprep.subr.mxu0 0.0
  %423 = vmatpush1.msra.mxu0 0.0
  %424 = vmatprep.subr.mxu0 0.0
  %425 = vmatpush1.msra.mxu0 0.0
  %426 = vmatprep.subr.mxu0 0.0
  %427 = vmatpush1.msra.mxu0 0.0
  %428 = vmatprep.subr.mxu0 0.0
  %429 = vmatpush1.msra.mxu0 0.0
  %430 = vmatprep.subr.mxu0 0.0
  %431 = vmatpush1.msra.mxu0 0.0
  %432 = vmatprep.subr.mxu0 0.0
  %433 = vmatpush1.msra.mxu0 0.0
  %434 = vmatprep.subr.mxu0 0.0
  %435 = vmatpush1.msra.mxu0 0.0
  %436 = vmatprep.subr.mxu0 0.0
  %437 = vmatpush1.msra.mxu0 0.0
  %438 = vmatprep.subr.mxu0 0.0
  %439 = vmatpush1.msra.mxu0 0.0
  %440 = vmatprep.subr.mxu0 0.0
  %441 = vmatpush1.msra.mxu0 0.0
  %442 = vmatprep.subr.mxu0 0.0
  %443 = vmatpush1.msra.mxu0 0.0
  %444 = vmatprep.subr.mxu0 0.0
  %445 = vmatpush1.msra.mxu0 0.0
  %446 = vmatprep.subr.mxu0 0.0
  %447 = vmatpush1.msra.mxu0 0.0
  %448 = vmatprep.subr.mxu0 0.0
  %449 = vmatpush1.msra.mxu0 0.0
  %450 = vmatprep.subr.mxu0 0.0
  %451 = vmatpush1.msra.mxu0 0.0
  %452 = vmatprep.subr.mxu0 0.0
  %453 = vmatpush1.msra.mxu0 0.0
  %454 = vmatprep.subr.mxu0 0.0
  %455 = vmatpush1.msra.mxu0 0.0
  %456 = vmatprep.subr.mxu0 0.0
  %457 = vmatpush1.msra.mxu0 0.0
  %458 = vmatprep.subr.mxu0 0.0
  %459 = vmatpush1.msra.mxu0 0.0
  %460 = vmatprep.subr.mxu0 0.0
  %461 = vmatpush1.msra.mxu0 0.0
  %462 = vmatprep.subr.mxu0 0.0
  %463 = vmatpush1.msra.mxu0 0.0
  %464 = vmatprep.subr.mxu0 0.0
  %465 = vmatpush1.msra.mxu0 0.0
  %466 = vmatprep.subr.mxu0 0.0
  %467 = vmatpush1.msra.mxu0 0.0
  %468 = vmatprep.subr.mxu0 0.0
  %469 = vmatpush1.msra.mxu0 0.0
  %470 = vmatprep.mubr.f32.mxu0 0.0
  %471 = vmatmul.mubr.f32.gmra.mrb[0].mxu0 %v404
  %v472 = vpop.f32.mrb[0].mxu0
  %v473 = vadd.f32 0.0, %v472
  %v474 = vpop.f32.mrb[0].mxu0
  %475 = vdwg.mxu0
  %v476 = vmul.f32 %v373, 0.8
  %v477 = vrot.slane %v73, 3
  %v478 = vrot.slane %v74, 2
  %v479 = vsel %vm153, %v478, %v477
  %v481 = vadd.f32 %v476, %v479
  %v482 = vadd.f32 %v481, %v473
  %v483 = vtanh.pop %v482
  %v486 = vunpack.c.l.s4 1966171168
  %v487 = vunpack.c.0.s8 %v486
  %v488 = vlaneseq
  %v489 = vshrl.u32 %v488, 7
  %v490 = vsub.s32 %v487, %v489
  %v491 = vrot.slane %v483, %v490
  %v492 = vcombine.high %v491, %v491
  %v494 = vunpack.c.l.s4 1966171168
  %v495 = vunpack.c.0.s8 %v494
  %v496 = vlaneseq
  %v497 = vshrl.u32 %v496, 7
  %v498 = vsub.s32 %v495, %v497
  %v499 = vrot.slane %v491, %v498
  %v501 = vunpack.c.l.s4 1966171168
  %v502 = vunpack.c.0.s8 %v501
  %v503 = vlaneseq
  %v504 = vshrl.u32 %v503, 7
  %v505 = vsub.s32 %v502, %v504
  %v506 = vrot.slane %v492, %v505
  %s509 = sadd.s32 0, 3
  %s510 = scalar_lea.vmem [#allocation4], %s509
  %511 = vst.msk [vmem:[%s510] sm:$0x1] %vm184, %v499
  %512 = vst.msk [vmem:[%s510 + $0x8] sm:$0x1] %vm184, %v506
  %v513 = vsel %vm75, %v483, 0
  %515 = vmatprep.subr.mxu0 0.0
  %516 = vmatpush1.msra.mxu0 %v39
  %517 = vmatprep.subr.mxu0 0.0
  %518 = vmatpush1.msra.mxu0 %v40
  %519 = vmatprep.subr.mxu0 0.0
  %520 = vmatpush1.msra.mxu0 %v41
  %521 = vmatprep.subr.mxu0 0.0
  %522 = vmatpush1.msra.mxu0 %v42
  %523 = vmatprep.subr.mxu0 0.0
  %524 = vmatpush1.msra.mxu0 0.0
  %525 = vmatprep.subr.mxu0 0.0
  %526 = vmatpush1.msra.mxu0 0.0
  %527 = vmatprep.subr.mxu0 0.0
  %528 = vmatpush1.msra.mxu0 0.0
  %529 = vmatprep.subr.mxu0 0.0
  %530 = vmatpush1.msra.mxu0 0.0
  %531 = vmatprep.subr.mxu0 0.0
  %532 = vmatpush1.msra.mxu0 0.0
  %533 = vmatprep.subr.mxu0 0.0
  %534 = vmatpush1.msra.mxu0 0.0
  %535 = vmatprep.subr.mxu0 0.0
  %536 = vmatpush1.msra.mxu0 0.0
  %537 = vmatprep.subr.mxu0 0.0
  %538 = vmatpush1.msra.mxu0 0.0
  %539 = vmatprep.subr.mxu0 0.0
  %540 = vmatpush1.msra.mxu0 0.0
  %541 = vmatprep.subr.mxu0 0.0
  %542 = vmatpush1.msra.mxu0 0.0
  %543 = vmatprep.subr.mxu0 0.0
  %544 = vmatpush1.msra.mxu0 0.0
  %545 = vmatprep.subr.mxu0 0.0
  %546 = vmatpush1.msra.mxu0 0.0
  %547 = vmatprep.subr.mxu0 0.0
  %548 = vmatpush1.msra.mxu0 0.0
  %549 = vmatprep.subr.mxu0 0.0
  %550 = vmatpush1.msra.mxu0 0.0
  %551 = vmatprep.subr.mxu0 0.0
  %552 = vmatpush1.msra.mxu0 0.0
  %553 = vmatprep.subr.mxu0 0.0
  %554 = vmatpush1.msra.mxu0 0.0
  %555 = vmatprep.subr.mxu0 0.0
  %556 = vmatpush1.msra.mxu0 0.0
  %557 = vmatprep.subr.mxu0 0.0
  %558 = vmatpush1.msra.mxu0 0.0
  %559 = vmatprep.subr.mxu0 0.0
  %560 = vmatpush1.msra.mxu0 0.0
  %561 = vmatprep.subr.mxu0 0.0
  %562 = vmatpush1.msra.mxu0 0.0
  %563 = vmatprep.subr.mxu0 0.0
  %564 = vmatpush1.msra.mxu0 0.0
  %565 = vmatprep.subr.mxu0 0.0
  %566 = vmatpush1.msra.mxu0 0.0
  %567 = vmatprep.subr.mxu0 0.0
  %568 = vmatpush1.msra.mxu0 0.0
  %569 = vmatprep.subr.mxu0 0.0
  %570 = vmatpush1.msra.mxu0 0.0
  %571 = vmatprep.subr.mxu0 0.0
  %572 = vmatpush1.msra.mxu0 0.0
  %573 = vmatprep.subr.mxu0 0.0
  %574 = vmatpush1.msra.mxu0 0.0
  %575 = vmatprep.subr.mxu0 0.0
  %576 = vmatpush1.msra.mxu0 0.0
  %577 = vmatprep.subr.mxu0 0.0
  %578 = vmatpush1.msra.mxu0 0.0
  %579 = vmatprep.mubr.f32.mxu0 0.0
  %580 = vmatmul.mubr.f32.gmra.mrb[0].mxu0 %v513
  %v581 = vpop.f32.mrb[0].mxu0
  %v582 = vadd.f32 0.0, %v581
  %v583 = vpop.f32.mrb[0].mxu0
  %584 = vdwg.mxu0
  %v585 = vmul.f32 %v482, 0.8
  %v586 = vrot.slane %v73, 4
  %v587 = vrot.slane %v74, 3
  %v588 = vsel %vm153, %v587, %v586
  %v590 = vadd.f32 %v585, %v588
  %v591 = vadd.f32 %v590, %v582
  %v592 = vtanh.pop %v591
  %v595 = vunpack.c.l.s4 1966171168
  %v596 = vunpack.c.0.s8 %v595
  %v597 = vlaneseq
  %v598 = vshrl.u32 %v597, 7
  %v599 = vsub.s32 %v596, %v598
  %v600 = vrot.slane %v592, %v599
  %v601 = vcombine.high %v600, %v600
  %v603 = vunpack.c.l.s4 1966171168
  %v604 = vunpack.c.0.s8 %v603
  %v605 = vlaneseq
  %v606 = vshrl.u32 %v605, 7
  %v607 = vsub.s32 %v604, %v606
  %v608 = vrot.slane %v600, %v607
  %v610 = vunpack.c.l.s4 1966171168
  %v611 = vunpack.c.0.s8 %v610
  %v612 = vlaneseq
  %v613 = vshrl.u32 %v612, 7
  %v614 = vsub.s32 %v611, %v613
  %v615 = vrot.slane %v601, %v614
  %s618 = sadd.s32 0, 4
  %s619 = scalar_lea.vmem [#allocation4], %s618
  %620 = vst.msk [vmem:[%s619] sm:$0x1] %vm184, %v608
  %621 = vst.msk [vmem:[%s619 + $0x8] sm:$0x1] %vm184, %v615
  %v622 = vsel %vm75, %v592, 0
  %624 = vmatprep.subr.mxu0 0.0
  %625 = vmatpush1.msra.mxu0 %v39
  %626 = vmatprep.subr.mxu0 0.0
  %627 = vmatpush1.msra.mxu0 %v40
  %628 = vmatprep.subr.mxu0 0.0
  %629 = vmatpush1.msra.mxu0 %v41
  %630 = vmatprep.subr.mxu0 0.0
  %631 = vmatpush1.msra.mxu0 %v42
  %632 = vmatprep.subr.mxu0 0.0
  %633 = vmatpush1.msra.mxu0 0.0
  %634 = vmatprep.subr.mxu0 0.0
  %635 = vmatpush1.msra.mxu0 0.0
  %636 = vmatprep.subr.mxu0 0.0
  %637 = vmatpush1.msra.mxu0 0.0
  %638 = vmatprep.subr.mxu0 0.0
  %639 = vmatpush1.msra.mxu0 0.0
  %640 = vmatprep.subr.mxu0 0.0
  %641 = vmatpush1.msra.mxu0 0.0
  %642 = vmatprep.subr.mxu0 0.0
  %643 = vmatpush1.msra.mxu0 0.0
  %644 = vmatprep.subr.mxu0 0.0
  %645 = vmatpush1.msra.mxu0 0.0
  %646 = vmatprep.subr.mxu0 0.0
  %647 = vmatpush1.msra.mxu0 0.0
  %648 = vmatprep.subr.mxu0 0.0
  %649 = vmatpush1.msra.mxu0 0.0
  %650 = vmatprep.subr.mxu0 0.0
  %651 = vmatpush1.msra.mxu0 0.0
  %652 = vmatprep.subr.mxu0 0.0
  %653 = vmatpush1.msra.mxu0 0.0
  %654 = vmatprep.subr.mxu0 0.0
  %655 = vmatpush1.msra.mxu0 0.0
  %656 = vmatprep.subr.mxu0 0.0
  %657 = vmatpush1.msra.mxu0 0.0
  %658 = vmatprep.subr.mxu0 0.0
  %659 = vmatpush1.msra.mxu0 0.0
  %660 = vmatprep.subr.mxu0 0.0
  %661 = vmatpush1.msra.mxu0 0.0
  %662 = vmatprep.subr.mxu0 0.0
  %663 = vmatpush1.msra.mxu0 0.0
  %664 = vmatprep.subr.mxu0 0.0
  %665 = vmatpush1.msra.mxu0 0.0
  %666 = vmatprep.subr.mxu0 0.0
  %667 = vmatpush1.msra.mxu0 0.0
  %668 = vmatprep.subr.mxu0 0.0
  %669 = vmatpush1.msra.mxu0 0.0
  %670 = vmatprep.subr.mxu0 0.0
  %671 = vmatpush1.msra.mxu0 0.0
  %672 = vmatprep.subr.mxu0 0.0
  %673 = vmatpush1.msra.mxu0 0.0
  %674 = vmatprep.subr.mxu0 0.0
  %675 = vmatpush1.msra.mxu0 0.0
  %676 = vmatprep.subr.mxu0 0.0
  %677 = vmatpush1.msra.mxu0 0.0
  %678 = vmatprep.subr.mxu0 0.0
  %679 = vmatpush1.msra.mxu0 0.0
  %680 = vmatprep.subr.mxu0 0.0
  %681 = vmatpush1.msra.mxu0 0.0
  %682 = vmatprep.subr.mxu0 0.0
  %683 = vmatpush1.msra.mxu0 0.0
  %684 = vmatprep.subr.mxu0 0.0
  %685 = vmatpush1.msra.mxu0 0.0
  %686 = vmatprep.subr.mxu0 0.0
  %687 = vmatpush1.msra.mxu0 0.0
  %688 = vmatprep.mubr.f32.mxu0 0.0
  %689 = vmatmul.mubr.f32.gmra.mrb[0].mxu0 %v622
  %v690 = vpop.f32.mrb[0].mxu0
  %v691 = vadd.f32 0.0, %v690
  %v692 = vpop.f32.mrb[0].mxu0
  %693 = vdwg.mxu0
  %v694 = vmul.f32 %v591, 0.8
  %v695 = vrot.slane %v73, 5
  %v696 = vrot.slane %v74, 4
  %v697 = vsel %vm153, %v696, %v695
  %v699 = vadd.f32 %v694, %v697
  %v700 = vadd.f32 %v699, %v691
  %v701 = vtanh.pop %v700
  %v704 = vunpack.c.l.s4 1966171168
  %v705 = vunpack.c.0.s8 %v704
  %v706 = vlaneseq
  %v707 = vshrl.u32 %v706, 7
  %v708 = vsub.s32 %v705, %v707
  %v709 = vrot.slane %v701, %v708
  %v710 = vcombine.high %v709, %v709
  %v712 = vunpack.c.l.s4 1966171168
  %v713 = vunpack.c.0.s8 %v712
  %v714 = vlaneseq
  %v715 = vshrl.u32 %v714, 7
  %v716 = vsub.s32 %v713, %v715
  %v717 = vrot.slane %v709, %v716
  %v719 = vunpack.c.l.s4 1966171168
  %v720 = vunpack.c.0.s8 %v719
  %v721 = vlaneseq
  %v722 = vshrl.u32 %v721, 7
  %v723 = vsub.s32 %v720, %v722
  %v724 = vrot.slane %v710, %v723
  %s727 = sadd.s32 0, 5
  %s728 = scalar_lea.vmem [#allocation4], %s727
  %729 = vst.msk [vmem:[%s728] sm:$0x1] %vm184, %v717
  %730 = vst.msk [vmem:[%s728 + $0x8] sm:$0x1] %vm184, %v724
  %v731 = vsel %vm75, %v701, 0
  %733 = vmatprep.subr.mxu0 0.0
  %734 = vmatpush1.msra.mxu0 %v39
  %735 = vmatprep.subr.mxu0 0.0
  %736 = vmatpush1.msra.mxu0 %v40
  %737 = vmatprep.subr.mxu0 0.0
  %738 = vmatpush1.msra.mxu0 %v41
  %739 = vmatprep.subr.mxu0 0.0
  %740 = vmatpush1.msra.mxu0 %v42
  %741 = vmatprep.subr.mxu0 0.0
  %742 = vmatpush1.msra.mxu0 0.0
  %743 = vmatprep.subr.mxu0 0.0
  %744 = vmatpush1.msra.mxu0 0.0
  %745 = vmatprep.subr.mxu0 0.0
  %746 = vmatpush1.msra.mxu0 0.0
  %747 = vmatprep.subr.mxu0 0.0
  %748 = vmatpush1.msra.mxu0 0.0
  %749 = vmatprep.subr.mxu0 0.0
  %750 = vmatpush1.msra.mxu0 0.0
  %751 = vmatprep.subr.mxu0 0.0
  %752 = vmatpush1.msra.mxu0 0.0
  %753 = vmatprep.subr.mxu0 0.0
  %754 = vmatpush1.msra.mxu0 0.0
  %755 = vmatprep.subr.mxu0 0.0
  %756 = vmatpush1.msra.mxu0 0.0
  %757 = vmatprep.subr.mxu0 0.0
  %758 = vmatpush1.msra.mxu0 0.0
  %759 = vmatprep.subr.mxu0 0.0
  %760 = vmatpush1.msra.mxu0 0.0
  %761 = vmatprep.subr.mxu0 0.0
  %762 = vmatpush1.msra.mxu0 0.0
  %763 = vmatprep.subr.mxu0 0.0
  %764 = vmatpush1.msra.mxu0 0.0
  %765 = vmatprep.subr.mxu0 0.0
  %766 = vmatpush1.msra.mxu0 0.0
  %767 = vmatprep.subr.mxu0 0.0
  %768 = vmatpush1.msra.mxu0 0.0
  %769 = vmatprep.subr.mxu0 0.0
  %770 = vmatpush1.msra.mxu0 0.0
  %771 = vmatprep.subr.mxu0 0.0
  %772 = vmatpush1.msra.mxu0 0.0
  %773 = vmatprep.subr.mxu0 0.0
  %774 = vmatpush1.msra.mxu0 0.0
  %775 = vmatprep.subr.mxu0 0.0
  %776 = vmatpush1.msra.mxu0 0.0
  %777 = vmatprep.subr.mxu0 0.0
  %778 = vmatpush1.msra.mxu0 0.0
  %779 = vmatprep.subr.mxu0 0.0
  %780 = vmatpush1.msra.mxu0 0.0
  %781 = vmatprep.subr.mxu0 0.0
  %782 = vmatpush1.msra.mxu0 0.0
  %783 = vmatprep.subr.mxu0 0.0
  %784 = vmatpush1.msra.mxu0 0.0
  %785 = vmatprep.subr.mxu0 0.0
  %786 = vmatpush1.msra.mxu0 0.0
  %787 = vmatprep.subr.mxu0 0.0
  %788 = vmatpush1.msra.mxu0 0.0
  %789 = vmatprep.subr.mxu0 0.0
  %790 = vmatpush1.msra.mxu0 0.0
  %791 = vmatprep.subr.mxu0 0.0
  %792 = vmatpush1.msra.mxu0 0.0
  %793 = vmatprep.subr.mxu0 0.0
  %794 = vmatpush1.msra.mxu0 0.0
  %795 = vmatprep.subr.mxu0 0.0
  %796 = vmatpush1.msra.mxu0 0.0
  %797 = vmatprep.mubr.f32.mxu0 0.0
  %798 = vmatmul.mubr.f32.gmra.mrb[0].mxu0 %v731
  %v799 = vpop.f32.mrb[0].mxu0
  %v800 = vadd.f32 0.0, %v799
  %v801 = vpop.f32.mrb[0].mxu0
  %802 = vdwg.mxu0
  %v803 = vmul.f32 %v700, 0.8
  %v804 = vrot.slane %v73, 6
  %v805 = vrot.slane %v74, 5
  %v806 = vsel %vm153, %v805, %v804
  %v808 = vadd.f32 %v803, %v806
  %v809 = vadd.f32 %v808, %v800
  %v810 = vtanh.pop %v809
  %v813 = vunpack.c.l.s4 1966171168
  %v814 = vunpack.c.0.s8 %v813
  %v815 = vlaneseq
  %v816 = vshrl.u32 %v815, 7
  %v817 = vsub.s32 %v814, %v816
  %v818 = vrot.slane %v810, %v817
  %v819 = vcombine.high %v818, %v818
  %v821 = vunpack.c.l.s4 1966171168
  %v822 = vunpack.c.0.s8 %v821
  %v823 = vlaneseq
  %v824 = vshrl.u32 %v823, 7
  %v825 = vsub.s32 %v822, %v824
  %v826 = vrot.slane %v818, %v825
  %v828 = vunpack.c.l.s4 1966171168
  %v829 = vunpack.c.0.s8 %v828
  %v830 = vlaneseq
  %v831 = vshrl.u32 %v830, 7
  %v832 = vsub.s32 %v829, %v831
  %v833 = vrot.slane %v819, %v832
  %s836 = sadd.s32 0, 6
  %s837 = scalar_lea.vmem [#allocation4], %s836
  %838 = vst.msk [vmem:[%s837] sm:$0x1] %vm184, %v826
  %839 = vst.msk [vmem:[%s837 + $0x8] sm:$0x1] %vm184, %v833
  %v840 = vsel %vm75, %v810, 0
  %842 = vmatprep.subr.mxu0 0.0
  %843 = vmatpush1.msra.mxu0 %v39
  %844 = vmatprep.subr.mxu0 0.0
  %845 = vmatpush1.msra.mxu0 %v40
  %846 = vmatprep.subr.mxu0 0.0
  %847 = vmatpush1.msra.mxu0 %v41
  %848 = vmatprep.subr.mxu0 0.0
  %849 = vmatpush1.msra.mxu0 %v42
  %850 = vmatprep.subr.mxu0 0.0
  %851 = vmatpush1.msra.mxu0 0.0
  %852 = vmatprep.subr.mxu0 0.0
  %853 = vmatpush1.msra.mxu0 0.0
  %854 = vmatprep.subr.mxu0 0.0
  %855 = vmatpush1.msra.mxu0 0.0
  %856 = vmatprep.subr.mxu0 0.0
  %857 = vmatpush1.msra.mxu0 0.0
  %858 = vmatprep.subr.mxu0 0.0
  %859 = vmatpush1.msra.mxu0 0.0
  %860 = vmatprep.subr.mxu0 0.0
  %861 = vmatpush1.msra.mxu0 0.0
  %862 = vmatprep.subr.mxu0 0.0
  %863 = vmatpush1.msra.mxu0 0.0
  %864 = vmatprep.subr.mxu0 0.0
  %865 = vmatpush1.msra.mxu0 0.0
  %866 = vmatprep.subr.mxu0 0.0
  %867 = vmatpush1.msra.mxu0 0.0
  %868 = vmatprep.subr.mxu0 0.0
  %869 = vmatpush1.msra.mxu0 0.0
  %870 = vmatprep.subr.mxu0 0.0
  %871 = vmatpush1.msra.mxu0 0.0
  %872 = vmatprep.subr.mxu0 0.0
  %873 = vmatpush1.msra.mxu0 0.0
  %874 = vmatprep.subr.mxu0 0.0
  %875 = vmatpush1.msra.mxu0 0.0
  %876 = vmatprep.subr.mxu0 0.0
  %877 = vmatpush1.msra.mxu0 0.0
  %878 = vmatprep.subr.mxu0 0.0
  %879 = vmatpush1.msra.mxu0 0.0
  %880 = vmatprep.subr.mxu0 0.0
  %881 = vmatpush1.msra.mxu0 0.0
  %882 = vmatprep.subr.mxu0 0.0
  %883 = vmatpush1.msra.mxu0 0.0
  %884 = vmatprep.subr.mxu0 0.0
  %885 = vmatpush1.msra.mxu0 0.0
  %886 = vmatprep.subr.mxu0 0.0
  %887 = vmatpush1.msra.mxu0 0.0
  %888 = vmatprep.subr.mxu0 0.0
  %889 = vmatpush1.msra.mxu0 0.0
  %890 = vmatprep.subr.mxu0 0.0
  %891 = vmatpush1.msra.mxu0 0.0
  %892 = vmatprep.subr.mxu0 0.0
  %893 = vmatpush1.msra.mxu0 0.0
  %894 = vmatprep.subr.mxu0 0.0
  %895 = vmatpush1.msra.mxu0 0.0
  %896 = vmatprep.subr.mxu0 0.0
  %897 = vmatpush1.msra.mxu0 0.0
  %898 = vmatprep.subr.mxu0 0.0
  %899 = vmatpush1.msra.mxu0 0.0
  %900 = vmatprep.subr.mxu0 0.0
  %901 = vmatpush1.msra.mxu0 0.0
  %902 = vmatprep.subr.mxu0 0.0
  %903 = vmatpush1.msra.mxu0 0.0
  %904 = vmatprep.subr.mxu0 0.0
  %905 = vmatpush1.msra.mxu0 0.0
  %906 = vmatprep.mubr.f32.mxu0 0.0
  %907 = vmatmul.mubr.f32.gmra.mrb[0].mxu0 %v840
  %v908 = vpop.f32.mrb[0].mxu0
  %v909 = vadd.f32 0.0, %v908
  %v910 = vpop.f32.mrb[0].mxu0
  %911 = vdwg.mxu0
  %v912 = vmul.f32 %v809, 0.8
  %v913 = vrot.slane %v73, 7
  %v914 = vrot.slane %v74, 6
  %v915 = vsel %vm153, %v914, %v913
  %v917 = vadd.f32 %v912, %v915
  %v918 = vadd.f32 %v917, %v909
  %v919 = vtanh.pop %v918
  %v922 = vunpack.c.l.s4 1966171168
  %v923 = vunpack.c.0.s8 %v922
  %v924 = vlaneseq
  %v925 = vshrl.u32 %v924, 7
  %v926 = vsub.s32 %v923, %v925
  %v927 = vrot.slane %v919, %v926
  %v928 = vcombine.high %v927, %v927
  %v930 = vunpack.c.l.s4 1966171168
  %v931 = vunpack.c.0.s8 %v930
  %v932 = vlaneseq
  %v933 = vshrl.u32 %v932, 7
  %v934 = vsub.s32 %v931, %v933
  %v935 = vrot.slane %v927, %v934
  %v937 = vunpack.c.l.s4 1966171168
  %v938 = vunpack.c.0.s8 %v937
  %v939 = vlaneseq
  %v940 = vshrl.u32 %v939, 7
  %v941 = vsub.s32 %v938, %v940
  %v942 = vrot.slane %v928, %v941
  %s945 = sadd.s32 0, 7
  %s946 = scalar_lea.vmem [#allocation4], %s945
  %947 = vst.msk [vmem:[%s946] sm:$0x1] %vm184, %v935
  %948 = vst.msk [vmem:[%s946 + $0x8] sm:$0x1] %vm184, %v942
  %vm949 = vcmask 254976
  %950 = vst.msk [vmem:[#allocation2] sm:$0x3] %vm949, %v918
  %951 = vst.msk [vmem:[#allocation3] sm:$0x3] %vm949, %v919
  %v952 = vld [vmem:[#allocation4] sm:$0xff]
  %v953 = vld [vmem:[#allocation4 + $0x8] sm:$0xff]
  %v955 = vsel %vm75, %v952, 0
  %v958 = vsel %vm75, %v953, 0
  %960 = vmatprep.subr.mxu0 0.0
  %961 = vmatpush1.msra.mxu0 %v43
  %962 = vmatprep.subr.mxu0 0.0
  %963 = vmatpush1.msra.mxu0 %v44
  %964 = vmatprep.subr.mxu0 0.0
  %965 = vmatpush1.msra.mxu0 %v45
  %966 = vmatprep.subr.mxu0 0.0
  %967 = vmatpush1.msra.mxu0 %v46
  %968 = vmatprep.subr.mxu0 0.0
  %969 = vmatpush1.msra.mxu0 0.0
  %970 = vmatprep.subr.mxu0 0.0
  %971 = vmatpush1.msra.mxu0 0.0
  %972 = vmatprep.subr.mxu0 0.0
  %973 = vmatpush1.msra.mxu0 0.0
  %974 = vmatprep.subr.mxu0 0.0
  %975 = vmatpush1.msra.mxu0 0.0
  %976 = vmatprep.subr.mxu0 0.0
  %977 = vmatpush1.msra.mxu0 0.0
  %978 = vmatprep.subr.mxu0 0.0
  %979 = vmatpush1.msra.mxu0 0.0
  %980 = vmatprep.subr.mxu0 0.0
  %981 = vmatpush1.msra.mxu0 0.0
  %982 = vmatprep.subr.mxu0 0.0
  %983 = vmatpush1.msra.mxu0 0.0
  %984 = vmatprep.subr.mxu0 0.0
  %985 = vmatpush1.msra.mxu0 0.0
  %986 = vmatprep.subr.mxu0 0.0
  %987 = vmatpush1.msra.mxu0 0.0
  %988 = vmatprep.subr.mxu0 0.0
  %989 = vmatpush1.msra.mxu0 0.0
  %990 = vmatprep.subr.mxu0 0.0
  %991 = vmatpush1.msra.mxu0 0.0
  %992 = vmatprep.subr.mxu0 0.0
  %993 = vmatpush1.msra.mxu0 0.0
  %994 = vmatprep.subr.mxu0 0.0
  %995 = vmatpush1.msra.mxu0 0.0
  %996 = vmatprep.subr.mxu0 0.0
  %997 = vmatpush1.msra.mxu0 0.0
  %998 = vmatprep.subr.mxu0 0.0
  %999 = vmatpush1.msra.mxu0 0.0
  %1000 = vmatprep.subr.mxu0 0.0
  %1001 = vmatpush1.msra.mxu0 0.0
  %1002 = vmatprep.subr.mxu0 0.0
  %1003 = vmatpush1.msra.mxu0 0.0
  %1004 = vmatprep.subr.mxu0 0.0
  %1005 = vmatpush1.msra.mxu0 0.0
  %1006 = vmatprep.subr.mxu0 0.0
  %1007 = vmatpush1.msra.mxu0 0.0
  %1008 = vmatprep.subr.mxu0 0.0
  %1009 = vmatpush1.msra.mxu0 0.0
  %1010 = vmatprep.subr.mxu0 0.0
  %1011 = vmatpush1.msra.mxu0 0.0
  %1012 = vmatprep.subr.mxu0 0.0
  %1013 = vmatpush1.msra.mxu0 0.0
  %1014 = vmatprep.subr.mxu0 0.0
  %1015 = vmatpush1.msra.mxu0 0.0
  %1016 = vmatprep.subr.mxu0 0.0
  %1017 = vmatpush1.msra.mxu0 0.0
  %1018 = vmatprep.subr.mxu0 0.0
  %1019 = vmatpush1.msra.mxu0 0.0
  %1020 = vmatprep.subr.mxu0 0.0
  %1021 = vmatpush1.msra.mxu0 0.0
  %1022 = vmatprep.subr.mxu0 0.0
  %1023 = vmatpush1.msra.mxu0 0.0
  %1024 = vmatprep.mubr.f32.mxu0 0.0
  %1025 = vmatmul.mubr.f32.gmra.mrb[0].mxu0 %v955
  %v1026 = vpop.f32.mrb[0].mxu0
  %v1027 = vadd.f32 0.0, %v1026
  %v1028 = vpop.f32.mrb[0].mxu0
  %1029 = vmatprep.mubr.f32.mxu0 0.0
  %1030 = vmatmul.mubr.f32.gmra.mrb[0].mxu0 %v958
  %v1031 = vpop.f32.mrb[0].mxu0
  %v1032 = vadd.f32 0.0, %v1031
  %v1033 = vpop.f32.mrb[0].mxu0
  %1034 = vdwg.mxu0
  %vm1035 = vcmask 7168
  %1036 = vst.msk [vmem:[%s6] sm:$0xff] %vm1035, %v1027
  %1037 = vst.msk [vmem:[%s6 + $0x8] sm:$0xff] %vm1035, %v1032
  // Predicated region
  $region30: #{tpu_custom_call.1} parent=0 // pred_check
    _
  $region31: #{tpu_custom_call.1} parent=0 // pred_check_branch
    %1039 = sbr.rel (0) target = $region33
  $region32: #{tpu_custom_call.1} parent=0 // pred_region
    _
  $region33: #{tpu_custom_call.1} parent=0 // pred_fallthru
    _
  // Predicated region
  $region34: #{tpu_custom_call.1} parent=0 // pred_check
    _
  $region35: #{tpu_custom_call.1} parent=0 // pred_check_branch
    %1041 = sbr.rel (0) target = $region37
  $region36: #{tpu_custom_call.1} parent=0 // pred_region
    _
  $region37: #{tpu_custom_call.1} parent=0 // pred_fallthru
    _

</llo_original>
